<compile_context>
chip_gen: v5e
topology: v5e:2x2
jax: 0.10.0
libtpu: 0.0.40
codegen_flags: <defaults>
</compile_context>

<pallas_src>
import functools

import jax
import jax.numpy as jnp
from jax.experimental import pallas as pl
from jax.experimental.pallas import tpu as pltpu


def _vmem():
    return pl.BlockSpec(memory_space=pltpu.MemorySpace.VMEM)


# --------------------------- fused forward kernel ----------------------------
def fused_graphnet_kernel(
        x_ref, aw_ref, arel_ref, memt_ref,
        wrel_ref, wroot_ref, brel_ref, wper_ref, root_ref, brgcn_ref,
        w1sx_ref, w1so_ref, w1mx_ref, w1mo_ref, b1_ref, w2_ref, b2_ref,
        o_ref, *, num_relations):
    f32 = jnp.float32

    x = x_ref[...]                                          # [N, F]

    # ---- GraphConv (edge-weighted add aggregation) + ReLU -------------------
    agg = jnp.dot(aw_ref[...], x, preferred_element_type=f32)          # [N, F]
    out1 = (jnp.dot(agg, wrel_ref[...], preferred_element_type=f32)
            + jnp.dot(x, wroot_ref[...], preferred_element_type=f32)
            + brel_ref[...])
    out1 = jnp.maximum(out1, 0.0)                           # [N, H]

    # ---- RGCNConv (mean aggregation per relation, basis weights) + ReLU -----
    out2 = (jnp.dot(out1, root_ref[...], preferred_element_type=f32)
            + brgcn_ref[...])                               # [N, H]
    for r in range(num_relations):                          # static, R is tiny
        a_r = arel_ref[r]                                   # [N, N]
        deg = jnp.sum(a_r, axis=-1, keepdims=True)          # [N, 1]
        m_r = (jnp.dot(a_r, out1, preferred_element_type=f32)
               / jnp.maximum(deg, 1.0))                     # scatter_mean
        out2 = out2 + jnp.dot(m_r, wper_ref[r], preferred_element_type=f32)
    out2 = jnp.maximum(out2, 0.0)                           # [N, H]

    # ---- global add/max pooling + MLP head + log_softmax --------------------
    memt = memt_ref[...]                                    # [G, N]
    sum_x = jnp.dot(memt, x, preferred_element_type=f32)    # [G, F]  (MXU)
    sum_o = jnp.dot(memt, out2, preferred_element_type=f32) # [G, H]  (MXU)

    mask = memt[:, :, None] > 0.0                           # [G, N, 1]
    neg = jnp.float32(-1e30)
    max_x = jnp.max(jnp.where(mask, x[None, :, :], neg), axis=1)     # [G, F]
    max_o = jnp.max(jnp.where(mask, out2[None, :, :], neg), axis=1)  # [G, H]

    # TODO(synk): dropout omitted (eval-mode identity).
    hid = (jnp.dot(sum_x, w1sx_ref[...], preferred_element_type=f32)
           + jnp.dot(sum_o, w1so_ref[...], preferred_element_type=f32)
           + jnp.dot(max_x, w1mx_ref[...], preferred_element_type=f32)
           + jnp.dot(max_o, w1mo_ref[...], preferred_element_type=f32)
           + b1_ref[...])
    hid = jnp.maximum(hid, 0.0)                             # [G, H]
    logits = (jnp.dot(hid, w2_ref[...], preferred_element_type=f32)
              + b2_ref[...])                                # [G, C]
    m = jnp.max(logits, axis=-1, keepdims=True)
    z = logits - m
    lse = jnp.log(jnp.sum(jnp.exp(z), axis=-1, keepdims=True))
    o_ref[...] = z - lse                                    # log_softmax, f32


# ------------------------------ full forward ---------------------------------
def graph_network_forward(params, x, a_w, a_rel, member_ng):
    n, f_dim = x.shape
    r = a_rel.shape[0]
    g = member_ng.shape[1]
    h = params["root"].shape[0]
    c = params["w2"].shape[1]
    d = f_dim + h

    # Trace-time parameter prep (tiny one-off XLA ops, fused under jit):
    #   collapse the RGCN basis decomposition into one [R, H, H] weight and
    #   split the head weight W1 into its sum/max x/out2 row blocks.
    w_per = jnp.einsum("rb,bio->rio", params["comp"], params["basis"])  # [R,H,H]
    w1 = params["w1"]                                   # [2*(F+H), H]
    w1_sx = w1[:f_dim]                                  # sum-pool, x part
    w1_so = w1[f_dim:d]                                 # sum-pool, out2 part
    w1_mx = w1[d:d + f_dim]                             # max-pool, x part
    w1_mo = w1[d + f_dim:]                              # max-pool, out2 part
    mem_t = member_ng.T                                 # [G, N]

    flops = 2 * (n * n * f_dim + 2 * n * f_dim * h + r * n * n * h
                 + (r + 1) * n * h * h + g * n * d + 2 * g * d * h + g * h * c)
    bytes_accessed = 4 * (n * f_dim + n * n + r * n * n + g * n
                          + 2 * f_dim * h + r * h * h + h * h
                          + 2 * d * h + h * c + 2 * h + c + g * c)

    kernel = functools.partial(fused_graphnet_kernel, num_relations=r)
    return pl.pallas_call(
        kernel,
        out_shape=jax.ShapeDtypeStruct((g, c), jnp.float32),
        in_specs=[_vmem()] * 17,
        out_specs=_vmem(),
        compiler_params=pltpu.CompilerParams(vmem_limit_bytes=32 * 1024 * 1024),
        cost_estimate=pl.CostEstimate(flops=flops,
                                      transcendentals=g * (c + 1),
                                      bytes_accessed=bytes_accessed),
    )(x, a_w, a_rel, mem_t,
      params["wrel"], params["wroot"], params["brel"],
      w_per, params["root"], params["rgcn_bias"],
      w1_sx, w1_so, w1_mx, w1_mo, params["b1"],
      params["w2"], params["b2"])


# ------------------------------ pure-JAX reference ----------------------------
def reference_forward(params, x, a_w, a_rel, member_ng):
    agg = a_w @ x
    out1 = jnp.maximum(agg @ params["wrel"] + x @ params["wroot"] + params["brel"], 0.0)
    wpr = jnp.einsum("rb,bio->rio", params["comp"], params["basis"])
    out2 = out1 @ params["root"] + params["rgcn_bias"]
    for r in range(a_rel.shape[0]):
        a = a_rel[r]
        deg = a.sum(-1, keepdims=True)
        out2 = out2 + ((a @ out1) / jnp.maximum(deg, 1.0)) @ wpr[r]
    out2 = jnp.maximum(out2, 0.0)
    feats = jnp.concatenate([x, out2], axis=-1)
    sum_f = member_ng.T @ feats
    mask = member_ng.T[:, :, None] > 0
    max_f = jnp.max(jnp.where(mask, feats[None, :, :], -1e30), axis=1)
    cat = jnp.concatenate([sum_f, max_f], axis=-1)
    hid = jnp.maximum(cat @ params["w1"] + params["b1"], 0.0)
    logits = hid @ params["w2"] + params["b2"]
    return jax.nn.log_softmax(logits, axis=-1)


if __name__ == "__main__":
    F_DIM, HID, R, NCLS, NBASES = 16, 32, 3, 5, 30
    N, E, G = 24, 64, 2

    key = jax.random.PRNGKey(0)
    ks = jax.random.split(key, 20)

    # ---------------- inputs -------------------------------------------------
    x = jax.random.normal(ks[0], (N, F_DIM), jnp.float32)
    src = jax.random.randint(ks[1], (E,), 0, N)
    dst = jax.random.randint(ks[2], (E,), 0, N)
    edge_index = jnp.stack([src, dst], axis=0)                 # [2, E]
    edge_weight = jax.random.uniform(ks[3], (E,), jnp.float32, 0.1, 1.0)
    edge_type = jax.random.randint(ks[4], (E,), 0, R)
    graph_batch = jnp.concatenate(
        [jnp.zeros((N // 2,), jnp.int32), jnp.ones((N - N // 2,), jnp.int32)])

    # ---------------- parameters (deterministic synthetic init) --------------
    s = 0.1
    params = {
        # GraphConv: lin_rel (with bias) + lin_root (no bias); stored [in, out]
        "wrel": s * jax.random.normal(ks[5], (F_DIM, HID), jnp.float32),
        "wroot": s * jax.random.normal(ks[6], (F_DIM, HID), jnp.float32),
        "brel": s * jax.random.normal(ks[7], (1, HID), jnp.float32),
        # RGCNConv with num_bases basis decomposition
        "basis": s * jax.random.normal(ks[8], (NBASES, HID, HID), jnp.float32),
        "comp": s * jax.random.normal(ks[9], (R, NBASES), jnp.float32),
        "root": s * jax.random.normal(ks[10], (HID, HID), jnp.float32),
        "rgcn_bias": s * jax.random.normal(ks[11], (1, HID), jnp.float32),
        # head: Linear(2*(F+H) -> H), Linear(H -> NCLS)
        "w1": s * jax.random.normal(ks[12], (2 * (F_DIM + HID), HID), jnp.float32),
        "b1": s * jax.random.normal(ks[13], (1, HID), jnp.float32),
        "w2": s * jax.random.normal(ks[14], (HID, NCLS), jnp.float32),
        "b2": s * jax.random.normal(ks[15], (1, NCLS), jnp.float32),
    }

    # ---------------- dense graph operators (trace-time glue) ----------------
    a_w = jnp.zeros((N, N), jnp.float32).at[edge_index[1], edge_index[0]].add(edge_weight)
    a_rel = jnp.zeros((R, N, N), jnp.float32).at[
        edge_type, edge_index[1], edge_index[0]].add(1.0)
    member_ng = (graph_batch[:, None] == jnp.arange(G)[None, :]).astype(jnp.float32)

    # ---------------- run -----------------------------------------------------
    forward_jit = jax.jit(graph_network_forward)
    log_prob = forward_jit(params, x, a_w, a_rel, member_ng)
    log_prob = jax.block_until_ready(log_prob)

    ref = reference_forward(params, x, a_w, a_rel, member_ng)

    assert log_prob.shape == (G, NCLS), log_prob.shape
    assert bool(jnp.all(jnp.isfinite(log_prob)))
    # rows of log_softmax must sum (in prob space) to 1
    assert bool(jnp.allclose(jnp.sum(jnp.exp(log_prob), axis=-1), 1.0, atol=1e-3))
    assert bool(jnp.allclose(log_prob, ref, atol=1e-2, rtol=1e-2)), (
        float(jnp.max(jnp.abs(log_prob - ref))))

    print("KERNEL_OK")
</pallas_src>

<mosaic_0001>
module attributes {stable_mosaic.version = 11 : i64} {
  func.func @fused_graphnet_kernel(%arg0: memref<24x16xf32, #tpu.memory_space<vmem>>, %arg1: memref<24x24xf32, #tpu.memory_space<vmem>>, %arg2: memref<3x24x24xf32, #tpu.memory_space<vmem>>, %arg3: memref<2x24xf32, #tpu.memory_space<vmem>>, %arg4: memref<16x32xf32, #tpu.memory_space<vmem>>, %arg5: memref<16x32xf32, #tpu.memory_space<vmem>>, %arg6: memref<1x32xf32, #tpu.memory_space<vmem>>, %arg7: memref<3x32x32xf32, #tpu.memory_space<vmem>>, %arg8: memref<32x32xf32, #tpu.memory_space<vmem>>, %arg9: memref<1x32xf32, #tpu.memory_space<vmem>>, %arg10: memref<16x32xf32, #tpu.memory_space<vmem>>, %arg11: memref<32x32xf32, #tpu.memory_space<vmem>>, %arg12: memref<16x32xf32, #tpu.memory_space<vmem>>, %arg13: memref<32x32xf32, #tpu.memory_space<vmem>>, %arg14: memref<1x32xf32, #tpu.memory_space<vmem>>, %arg15: memref<32x5xf32, #tpu.memory_space<vmem>>, %arg16: memref<1x5xf32, #tpu.memory_space<vmem>>, %arg17: memref<2x5xf32, #tpu.memory_space<vmem>>) attributes {dimension_semantics = [], scalar_prefetch = 0 : i64, scratch_operands = 0 : i64, tpu.core_type = #tpu.core_type<tc>} {
    %c0 = arith.constant 0 : index
    %c0_0 = arith.constant 0 : index
    %0 = vector.load %arg0[%c0, %c0_0] : memref<24x16xf32, #tpu.memory_space<vmem>>, vector<24x16xf32>
    %c0_1 = arith.constant 0 : index
    %c0_2 = arith.constant 0 : index
    %1 = vector.load %arg1[%c0_1, %c0_2] : memref<24x24xf32, #tpu.memory_space<vmem>>, vector<24x24xf32>
    %cst = arith.constant dense<0.000000e+00> : vector<24x16xf32>
    %2 = tpu.matmul %1, %0, %cst {dimension_numbers = #tpu.dot_dimension_numbers<[1], [0], [0], [1], [0, 0, 1, 1], [], []>} : vector<24x24xf32>, vector<24x16xf32>, vector<24x16xf32> -> vector<24x16xf32>
    %c0_3 = arith.constant 0 : index
    %c0_4 = arith.constant 0 : index
    %3 = vector.load %arg4[%c0_3, %c0_4] : memref<16x32xf32, #tpu.memory_space<vmem>>, vector<16x32xf32>
    %cst_5 = arith.constant dense<0.000000e+00> : vector<24x32xf32>
    %4 = tpu.matmul %2, %3, %cst_5 {dimension_numbers = #tpu.dot_dimension_numbers<[1], [0], [0], [1], [0, 0, 1, 1], [], []>} : vector<24x16xf32>, vector<16x32xf32>, vector<24x32xf32> -> vector<24x32xf32>
    %c0_6 = arith.constant 0 : index
    %c0_7 = arith.constant 0 : index
    %5 = vector.load %arg5[%c0_6, %c0_7] : memref<16x32xf32, #tpu.memory_space<vmem>>, vector<16x32xf32>
    %cst_8 = arith.constant dense<0.000000e+00> : vector<24x32xf32>
    %6 = tpu.matmul %0, %5, %cst_8 {dimension_numbers = #tpu.dot_dimension_numbers<[1], [0], [0], [1], [0, 0, 1, 1], [], []>} : vector<24x16xf32>, vector<16x32xf32>, vector<24x32xf32> -> vector<24x32xf32>
    %7 = arith.addf %4, %6 : vector<24x32xf32>
    %c0_9 = arith.constant 0 : index
    %c0_10 = arith.constant 0 : index
    %8 = vector.load %arg6[%c0_9, %c0_10] : memref<1x32xf32, #tpu.memory_space<vmem>>, vector<1x32xf32>
    %9 = vector.broadcast %8 : vector<1x32xf32> to vector<24x32xf32>
    %10 = arith.addf %7, %9 : vector<24x32xf32>
    %cst_11 = arith.constant 0.000000e+00 : f32
    %11 = vector.broadcast %cst_11 : f32 to vector<24x32xf32>
    %12 = arith.maximumf %10, %11 : vector<24x32xf32>
    %c0_12 = arith.constant 0 : index
    %c0_13 = arith.constant 0 : index
    %13 = vector.load %arg8[%c0_12, %c0_13] : memref<32x32xf32, #tpu.memory_space<vmem>>, vector<32x32xf32>
    %cst_14 = arith.constant dense<0.000000e+00> : vector<24x32xf32>
    %14 = tpu.matmul %12, %13, %cst_14 {dimension_numbers = #tpu.dot_dimension_numbers<[1], [0], [0], [1], [0, 0, 1, 1], [], []>} : vector<24x32xf32>, vector<32x32xf32>, vector<24x32xf32> -> vector<24x32xf32>
    %c0_15 = arith.constant 0 : index
    %c0_16 = arith.constant 0 : index
    %15 = vector.load %arg9[%c0_15, %c0_16] : memref<1x32xf32, #tpu.memory_space<vmem>>, vector<1x32xf32>
    %16 = vector.broadcast %15 : vector<1x32xf32> to vector<24x32xf32>
    %17 = arith.addf %14, %16 : vector<24x32xf32>
    %c0_17 = arith.constant 0 : index
    %c0_18 = arith.constant 0 : index
    %c0_19 = arith.constant 0 : index
    %18 = vector.load %arg2[%c0_17, %c0_18, %c0_19] : memref<3x24x24xf32, #tpu.memory_space<vmem>>, vector<1x24x24xf32>
    %19 = vector.shape_cast %18 : vector<1x24x24xf32> to vector<24x24xf32>
    %cst_20 = arith.constant dense<0.000000e+00> : vector<24xf32>
    %20 = vector.multi_reduction <add>, %19, %cst_20 [1] : vector<24x24xf32> to vector<24xf32>
    %21 = vector.shape_cast %20 : vector<24xf32> to vector<24x1xf32>
    %cst_21 = arith.constant dense<0.000000e+00> : vector<24x32xf32>
    %22 = tpu.matmul %19, %12, %cst_21 {dimension_numbers = #tpu.dot_dimension_numbers<[1], [0], [0], [1], [0, 0, 1, 1], [], []>} : vector<24x24xf32>, vector<24x32xf32>, vector<24x32xf32> -> vector<24x32xf32>
    %cst_22 = arith.constant 1.000000e+00 : f32
    %23 = vector.broadcast %cst_22 : f32 to vector<24x1xf32>
    %24 = arith.maximumf %21, %23 : vector<24x1xf32>
    %25 = vector.broadcast %24 : vector<24x1xf32> to vector<24x32xf32>
    %26 = arith.divf %22, %25 : vector<24x32xf32>
    %c0_23 = arith.constant 0 : index
    %c0_24 = arith.constant 0 : index
    %c0_25 = arith.constant 0 : index
    %27 = vector.load %arg7[%c0_23, %c0_24, %c0_25] : memref<3x32x32xf32, #tpu.memory_space<vmem>>, vector<1x32x32xf32>
    %28 = vector.shape_cast %27 : vector<1x32x32xf32> to vector<32x32xf32>
    %cst_26 = arith.constant dense<0.000000e+00> : vector<24x32xf32>
    %29 = tpu.matmul %26, %28, %cst_26 {dimension_numbers = #tpu.dot_dimension_numbers<[1], [0], [0], [1], [0, 0, 1, 1], [], []>} : vector<24x32xf32>, vector<32x32xf32>, vector<24x32xf32> -> vector<24x32xf32>
    %30 = arith.addf %17, %29 : vector<24x32xf32>
    %c1 = arith.constant 1 : index
    %c0_27 = arith.constant 0 : index
    %c0_28 = arith.constant 0 : index
    %31 = vector.load %arg2[%c1, %c0_27, %c0_28] : memref<3x24x24xf32, #tpu.memory_space<vmem>>, vector<1x24x24xf32>
    %32 = vector.shape_cast %31 : vector<1x24x24xf32> to vector<24x24xf32>
    %cst_29 = arith.constant dense<0.000000e+00> : vector<24xf32>
    %33 = vector.multi_reduction <add>, %32, %cst_29 [1] : vector<24x24xf32> to vector<24xf32>
    %34 = vector.shape_cast %33 : vector<24xf32> to vector<24x1xf32>
    %cst_30 = arith.constant dense<0.000000e+00> : vector<24x32xf32>
    %35 = tpu.matmul %32, %12, %cst_30 {dimension_numbers = #tpu.dot_dimension_numbers<[1], [0], [0], [1], [0, 0, 1, 1], [], []>} : vector<24x24xf32>, vector<24x32xf32>, vector<24x32xf32> -> vector<24x32xf32>
    %cst_31 = arith.constant 1.000000e+00 : f32
    %36 = vector.broadcast %cst_31 : f32 to vector<24x1xf32>
    %37 = arith.maximumf %34, %36 : vector<24x1xf32>
    %38 = vector.broadcast %37 : vector<24x1xf32> to vector<24x32xf32>
    %39 = arith.divf %35, %38 : vector<24x32xf32>
    %c1_32 = arith.constant 1 : index
    %c0_33 = arith.constant 0 : index
    %c0_34 = arith.constant 0 : index
    %40 = vector.load %arg7[%c1_32, %c0_33, %c0_34] : memref<3x32x32xf32, #tpu.memory_space<vmem>>, vector<1x32x32xf32>
    %41 = vector.shape_cast %40 : vector<1x32x32xf32> to vector<32x32xf32>
    %cst_35 = arith.constant dense<0.000000e+00> : vector<24x32xf32>
    %42 = tpu.matmul %39, %41, %cst_35 {dimension_numbers = #tpu.dot_dimension_numbers<[1], [0], [0], [1], [0, 0, 1, 1], [], []>} : vector<24x32xf32>, vector<32x32xf32>, vector<24x32xf32> -> vector<24x32xf32>
    %43 = arith.addf %30, %42 : vector<24x32xf32>
    %c2 = arith.constant 2 : index
    %c0_36 = arith.constant 0 : index
    %c0_37 = arith.constant 0 : index
    %44 = vector.load %arg2[%c2, %c0_36, %c0_37] : memref<3x24x24xf32, #tpu.memory_space<vmem>>, vector<1x24x24xf32>
    %45 = vector.shape_cast %44 : vector<1x24x24xf32> to vector<24x24xf32>
    %cst_38 = arith.constant dense<0.000000e+00> : vector<24xf32>
    %46 = vector.multi_reduction <add>, %45, %cst_38 [1] : vector<24x24xf32> to vector<24xf32>
    %47 = vector.shape_cast %46 : vector<24xf32> to vector<24x1xf32>
    %cst_39 = arith.constant dense<0.000000e+00> : vector<24x32xf32>
    %48 = tpu.matmul %45, %12, %cst_39 {dimension_numbers = #tpu.dot_dimension_numbers<[1], [0], [0], [1], [0, 0, 1, 1], [], []>} : vector<24x24xf32>, vector<24x32xf32>, vector<24x32xf32> -> vector<24x32xf32>
    %cst_40 = arith.constant 1.000000e+00 : f32
    %49 = vector.broadcast %cst_40 : f32 to vector<24x1xf32>
    %50 = arith.maximumf %47, %49 : vector<24x1xf32>
    %51 = vector.broadcast %50 : vector<24x1xf32> to vector<24x32xf32>
    %52 = arith.divf %48, %51 : vector<24x32xf32>
    %c2_41 = arith.constant 2 : index
    %c0_42 = arith.constant 0 : index
    %c0_43 = arith.constant 0 : index
    %53 = vector.load %arg7[%c2_41, %c0_42, %c0_43] : memref<3x32x32xf32, #tpu.memory_space<vmem>>, vector<1x32x32xf32>
    %54 = vector.shape_cast %53 : vector<1x32x32xf32> to vector<32x32xf32>
    %cst_44 = arith.constant dense<0.000000e+00> : vector<24x32xf32>
    %55 = tpu.matmul %52, %54, %cst_44 {dimension_numbers = #tpu.dot_dimension_numbers<[1], [0], [0], [1], [0, 0, 1, 1], [], []>} : vector<24x32xf32>, vector<32x32xf32>, vector<24x32xf32> -> vector<24x32xf32>
    %56 = arith.addf %43, %55 : vector<24x32xf32>
    %cst_45 = arith.constant 0.000000e+00 : f32
    %57 = vector.broadcast %cst_45 : f32 to vector<24x32xf32>
    %58 = arith.maximumf %56, %57 : vector<24x32xf32>
    %c0_46 = arith.constant 0 : index
    %c0_47 = arith.constant 0 : index
    %59 = vector.load %arg3[%c0_46, %c0_47] : memref<2x24xf32, #tpu.memory_space<vmem>>, vector<2x24xf32>
    %cst_48 = arith.constant dense<0.000000e+00> : vector<2x16xf32>
    %60 = tpu.matmul %59, %0, %cst_48 {dimension_numbers = #tpu.dot_dimension_numbers<[1], [0], [0], [1], [0, 0, 1, 1], [], []>} : vector<2x24xf32>, vector<24x16xf32>, vector<2x16xf32> -> vector<2x16xf32>
    %cst_49 = arith.constant dense<0.000000e+00> : vector<2x32xf32>
    %61 = tpu.matmul %59, %58, %cst_49 {dimension_numbers = #tpu.dot_dimension_numbers<[1], [0], [0], [1], [0, 0, 1, 1], [], []>} : vector<2x24xf32>, vector<24x32xf32>, vector<2x32xf32> -> vector<2x32xf32>
    %62 = vector.shape_cast %59 : vector<2x24xf32> to vector<2x24x1xf32>
    %cst_50 = arith.constant 0.000000e+00 : f32
    %63 = vector.broadcast %cst_50 : f32 to vector<2x24x1xf32>
    %64 = arith.cmpf ogt, %62, %63 : vector<2x24x1xf32>
    %65 = vector.shape_cast %0 : vector<24x16xf32> to vector<1x24x16xf32>
    %cst_51 = arith.constant -1.000000e+30 : f32
    %66 = vector.shape_cast %64 : vector<2x24x1xi1> to vector<2x24x1xi1>
    %67 = vector.broadcast %66 : vector<2x24x1xi1> to vector<2x24x16xi1>
    %68 = vector.shape_cast %65 : vector<1x24x16xf32> to vector<1x24x16xf32>
    %69 = vector.broadcast %68 : vector<1x24x16xf32> to vector<2x24x16xf32>
    %70 = vector.broadcast %cst_51 : f32 to vector<2x24x16xf32>
    %71 = arith.select %67, %69, %70 : vector<2x24x16xi1>, vector<2x24x16xf32>
    %cst_52 = arith.constant dense<0xFF800000> : vector<2x16xf32>
    %72 = vector.multi_reduction <maximumf>, %71, %cst_52 [1] : vector<2x24x16xf32> to vector<2x16xf32>
    %73 = vector.shape_cast %58 : vector<24x32xf32> to vector<1x24x32xf32>
    %cst_53 = arith.constant -1.000000e+30 : f32
    %74 = vector.shape_cast %64 : vector<2x24x1xi1> to vector<2x24x1xi1>
    %75 = vector.broadcast %74 : vector<2x24x1xi1> to vector<2x24x32xi1>
    %76 = vector.shape_cast %73 : vector<1x24x32xf32> to vector<1x24x32xf32>
    %77 = vector.broadcast %76 : vector<1x24x32xf32> to vector<2x24x32xf32>
    %78 = vector.broadcast %cst_53 : f32 to vector<2x24x32xf32>
    %79 = arith.select %75, %77, %78 : vector<2x24x32xi1>, vector<2x24x32xf32>
    %cst_54 = arith.constant dense<0xFF800000> : vector<2x32xf32>
    %80 = vector.multi_reduction <maximumf>, %79, %cst_54 [1] : vector<2x24x32xf32> to vector<2x32xf32>
    %c0_55 = arith.constant 0 : index
    %c0_56 = arith.constant 0 : index
    %81 = vector.load %arg10[%c0_55, %c0_56] : memref<16x32xf32, #tpu.memory_space<vmem>>, vector<16x32xf32>
    %cst_57 = arith.constant dense<0.000000e+00> : vector<2x32xf32>
    %82 = tpu.matmul %60, %81, %cst_57 {dimension_numbers = #tpu.dot_dimension_numbers<[1], [0], [0], [1], [0, 0, 1, 1], [], []>} : vector<2x16xf32>, vector<16x32xf32>, vector<2x32xf32> -> vector<2x32xf32>
    %c0_58 = arith.constant 0 : index
    %c0_59 = arith.constant 0 : index
    %83 = vector.load %arg11[%c0_58, %c0_59] : memref<32x32xf32, #tpu.memory_space<vmem>>, vector<32x32xf32>
    %cst_60 = arith.constant dense<0.000000e+00> : vector<2x32xf32>
    %84 = tpu.matmul %61, %83, %cst_60 {dimension_numbers = #tpu.dot_dimension_numbers<[1], [0], [0], [1], [0, 0, 1, 1], [], []>} : vector<2x32xf32>, vector<32x32xf32>, vector<2x32xf32> -> vector<2x32xf32>
    %85 = arith.addf %82, %84 : vector<2x32xf32>
    %c0_61 = arith.constant 0 : index
    %c0_62 = arith.constant 0 : index
    %86 = vector.load %arg12[%c0_61, %c0_62] : memref<16x32xf32, #tpu.memory_space<vmem>>, vector<16x32xf32>
    %cst_63 = arith.constant dense<0.000000e+00> : vector<2x32xf32>
    %87 = tpu.matmul %72, %86, %cst_63 {dimension_numbers = #tpu.dot_dimension_numbers<[1], [0], [0], [1], [0, 0, 1, 1], [], []>} : vector<2x16xf32>, vector<16x32xf32>, vector<2x32xf32> -> vector<2x32xf32>
    %88 = arith.addf %85, %87 : vector<2x32xf32>
    %c0_64 = arith.constant 0 : index
    %c0_65 = arith.constant 0 : index
    %89 = vector.load %arg13[%c0_64, %c0_65] : memref<32x32xf32, #tpu.memory_space<vmem>>, vector<32x32xf32>
    %cst_66 = arith.constant dense<0.000000e+00> : vector<2x32xf32>
    %90 = tpu.matmul %80, %89, %cst_66 {dimension_numbers = #tpu.dot_dimension_numbers<[1], [0], [0], [1], [0, 0, 1, 1], [], []>} : vector<2x32xf32>, vector<32x32xf32>, vector<2x32xf32> -> vector<2x32xf32>
    %91 = arith.addf %88, %90 : vector<2x32xf32>
    %c0_67 = arith.constant 0 : index
    %c0_68 = arith.constant 0 : index
    %92 = vector.load %arg14[%c0_67, %c0_68] : memref<1x32xf32, #tpu.memory_space<vmem>>, vector<1x32xf32>
    %93 = vector.broadcast %92 : vector<1x32xf32> to vector<2x32xf32>
    %94 = arith.addf %91, %93 : vector<2x32xf32>
    %cst_69 = arith.constant 0.000000e+00 : f32
    %95 = vector.broadcast %cst_69 : f32 to vector<2x32xf32>
    %96 = arith.maximumf %94, %95 : vector<2x32xf32>
    %c0_70 = arith.constant 0 : index
    %c0_71 = arith.constant 0 : index
    %97 = vector.load %arg15[%c0_70, %c0_71] : memref<32x5xf32, #tpu.memory_space<vmem>>, vector<32x5xf32>
    %cst_72 = arith.constant dense<0.000000e+00> : vector<2x5xf32>
    %98 = tpu.matmul %96, %97, %cst_72 {dimension_numbers = #tpu.dot_dimension_numbers<[1], [0], [0], [1], [0, 0, 1, 1], [], []>} : vector<2x32xf32>, vector<32x5xf32>, vector<2x5xf32> -> vector<2x5xf32>
    %c0_73 = arith.constant 0 : index
    %c0_74 = arith.constant 0 : index
    %99 = vector.load %arg16[%c0_73, %c0_74] : memref<1x5xf32, #tpu.memory_space<vmem>>, vector<1x5xf32>
    %100 = vector.broadcast %99 : vector<1x5xf32> to vector<2x5xf32>
    %101 = arith.addf %98, %100 : vector<2x5xf32>
    %cst_75 = arith.constant dense<0xFF800000> : vector<2xf32>
    %102 = vector.multi_reduction <maximumf>, %101, %cst_75 [1] : vector<2x5xf32> to vector<2xf32>
    %103 = vector.shape_cast %102 : vector<2xf32> to vector<2x1xf32>
    %104 = vector.broadcast %103 : vector<2x1xf32> to vector<2x5xf32>
    %105 = arith.subf %101, %104 : vector<2x5xf32>
    %106 = math.exp %105 : vector<2x5xf32>
    %cst_76 = arith.constant dense<0.000000e+00> : vector<2xf32>
    %107 = vector.multi_reduction <add>, %106, %cst_76 [1] : vector<2x5xf32> to vector<2xf32>
    %108 = vector.shape_cast %107 : vector<2xf32> to vector<2x1xf32>
    %109 = math.log %108 : vector<2x1xf32>
    %110 = vector.broadcast %109 : vector<2x1xf32> to vector<2x5xf32>
    %111 = arith.subf %105, %110 : vector<2x5xf32>
    %c0_77 = arith.constant 0 : index
    %c0_78 = arith.constant 0 : index
    %112 = vector.load %arg17[%c0_77, %c0_78] : memref<2x5xf32, #tpu.memory_space<vmem>>, vector<2x5xf32>
    tpu.vector_store %arg17[%c0_77, %c0_78], %111 {strides = array<i32>} : memref<2x5xf32, #tpu.memory_space<vmem>>, vector<2x5xf32>,
    return
  }
}

</mosaic_0001>

<llo_original>
// kernel: graph_network_forward.1
$region0: #{graph_network_forward.1}
  #allocation0 [shape = 'u32[]', space=smem, size = 0x4, offset = 0x4, fixed_abs, tag = 'smem constant byte address 0x4 - core index']
  #allocation1 [shape = 'u32[72,128]{1,0:T(1,128)}', space=vmem, size = 0x9000, scoped, tag = 'internal scratch']
  %s0 = inlined_call_operand.vmem [shape: f32[24,16], index: 0, kind: input, shape index: {}]
  %s1 = inlined_call_operand.vmem [shape: f32[24,24], index: 1, kind: input, shape index: {}]
  %s2 = inlined_call_operand.vmem [shape: f32[3,24,24], index: 2, kind: input, shape index: {}]
  %s3 = inlined_call_operand.vmem [shape: f32[2,24], index: 3, kind: input, shape index: {}]
  %s4 = inlined_call_operand.vmem [shape: f32[16,32], index: 4, kind: input, shape index: {}]
  %s5 = inlined_call_operand.vmem [shape: f32[16,32], index: 5, kind: input, shape index: {}]
  %s6 = inlined_call_operand.vmem [shape: f32[1,32], index: 6, kind: input, shape index: {}]
  %s7 = inlined_call_operand.vmem [shape: f32[3,32,32], index: 7, kind: input, shape index: {}]
  %s8 = inlined_call_operand.vmem [shape: f32[32,32], index: 8, kind: input, shape index: {}]
  %s9 = inlined_call_operand.vmem [shape: f32[1,32], index: 9, kind: input, shape index: {}]
  %s10 = inlined_call_operand.vmem [shape: f32[16,32], index: 10, kind: input, shape index: {}]
  %s11 = inlined_call_operand.vmem [shape: f32[32,32], index: 11, kind: input, shape index: {}]
  %s12 = inlined_call_operand.vmem [shape: f32[16,32], index: 12, kind: input, shape index: {}]
  %s13 = inlined_call_operand.vmem [shape: f32[32,32], index: 13, kind: input, shape index: {}]
  %s14 = inlined_call_operand.vmem [shape: f32[1,32], index: 14, kind: input, shape index: {}]
  %s15 = inlined_call_operand.vmem [shape: f32[32,5], index: 15, kind: input, shape index: {}]
  %s16 = inlined_call_operand.vmem [shape: f32[1,5], index: 16, kind: input, shape index: {}]
  %s17 = inlined_call_operand.hbm [shape: f32[2,5], index: 17, kind: output, shape index: {}]
  %s18 = sld [smem:[#allocation0]]
  $region78: #{graph_network_forward.1} parent=0
    _
  %s20 = ssub.s32 1, %s18
  %s21 = scalar_select 0, %s20, %s18
  $region1: #{graph_network_forward.1} parent=0
    #allocation2 [shape = 'u8[1024]{0}', space=vmem, size = 0x400, scoped, tag = 'output window, operand 0, single buffered']
    #allocation3 [shape = 's32[1]{0}', space=sflag, size = 0x4, scoped, tag = 'scoped memory for graph_network_forward.1']
    %22 = vsyncpa [#allocation3], 0
    // Predicated region
    $region2: #{graph_network_forward.1} parent=1 // pred_check
      _
    $region3: #{graph_network_forward.1} parent=1 // pred_check_branch
      %24 = sbr.rel (0) target = $region5
    $region4: #{graph_network_forward.1} parent=1 // pred_region
      _
    $region5: #{graph_network_forward.1} parent=1 // pred_fallthru
      _
    // Predicated region
    $region6: #{graph_network_forward.1} parent=1 // pred_check
      _
    $region7: #{graph_network_forward.1} parent=1 // pred_check_branch
      %26 = sbr.rel (0) target = $region9
    $region8: #{graph_network_forward.1} parent=1 // pred_region
      _
    $region9: #{graph_network_forward.1} parent=1 // pred_fallthru
      _
    // Predicated region
    $region10: #{graph_network_forward.1} parent=1 // pred_check
      _
    $region11: #{graph_network_forward.1} parent=1 // pred_check_branch
      %28 = sbr.rel (0) target = $region13
    $region12: #{graph_network_forward.1} parent=1 // pred_region
      _
    $region13: #{graph_network_forward.1} parent=1 // pred_fallthru
      _
    // Predicated region
    $region14: #{graph_network_forward.1} parent=1 // pred_check
      _
    $region15: #{graph_network_forward.1} parent=1 // pred_check_branch
      %30 = sbr.rel (0) target = $region17
    $region16: #{graph_network_forward.1} parent=1 // pred_region
      _
    $region17: #{graph_network_forward.1} parent=1 // pred_fallthru
      _
    // Predicated region
    $region18: #{graph_network_forward.1} parent=1 // pred_check
      _
    $region19: #{graph_network_forward.1} parent=1 // pred_check_branch
      %32 = sbr.rel (0) target = $region21
    $region20: #{graph_network_forward.1} parent=1 // pred_region
      _
    $region21: #{graph_network_forward.1} parent=1 // pred_fallthru
      _
    // Predicated region
    $region22: #{graph_network_forward.1} parent=1 // pred_check
      _
    $region23: #{graph_network_forward.1} parent=1 // pred_check_branch
      %34 = sbr.rel (0) target = $region25
    $region24: #{graph_network_forward.1} parent=1 // pred_region
      _
    $region25: #{graph_network_forward.1} parent=1 // pred_fallthru
      _
    // Predicated region
    $region26: #{graph_network_forward.1} parent=1 // pred_check
      _
    $region27: #{graph_network_forward.1} parent=1 // pred_check_branch
      %36 = sbr.rel (0) target = $region29
    $region28: #{graph_network_forward.1} parent=1 // pred_region
      _
    $region29: #{graph_network_forward.1} parent=1 // pred_fallthru
      _
    // Predicated region
    $region30: #{graph_network_forward.1} parent=1 // pred_check
      _
    $region31: #{graph_network_forward.1} parent=1 // pred_check_branch
      %38 = sbr.rel (0) target = $region33
    $region32: #{graph_network_forward.1} parent=1 // pred_region
      _
    $region33: #{graph_network_forward.1} parent=1 // pred_fallthru
      _
    // Predicated region
    $region34: #{graph_network_forward.1} parent=1 // pred_check
      _
    $region35: #{graph_network_forward.1} parent=1 // pred_check_branch
      %40 = sbr.rel (0) target = $region37
    $region36: #{graph_network_forward.1} parent=1 // pred_region
      _
    $region37: #{graph_network_forward.1} parent=1 // pred_fallthru
      _
    // Predicated region
    $region38: #{graph_network_forward.1} parent=1 // pred_check
      _
    $region39: #{graph_network_forward.1} parent=1 // pred_check_branch
      %42 = sbr.rel (0) target = $region41
    $region40: #{graph_network_forward.1} parent=1 // pred_region
      _
    $region41: #{graph_network_forward.1} parent=1 // pred_fallthru
      _
    // Predicated region
    $region42: #{graph_network_forward.1} parent=1 // pred_check
      _
    $region43: #{graph_network_forward.1} parent=1 // pred_check_branch
      %44 = sbr.rel (0) target = $region45
    $region44: #{graph_network_forward.1} parent=1 // pred_region
      _
    $region45: #{graph_network_forward.1} parent=1 // pred_fallthru
      _
    // Predicated region
    $region46: #{graph_network_forward.1} parent=1 // pred_check
      _
    $region47: #{graph_network_forward.1} parent=1 // pred_check_branch
      %46 = sbr.rel (0) target = $region49
    $region48: #{graph_network_forward.1} parent=1 // pred_region
      _
    $region49: #{graph_network_forward.1} parent=1 // pred_fallthru
      _
    // Predicated region
    $region50: #{graph_network_forward.1} parent=1 // pred_check
      _
    $region51: #{graph_network_forward.1} parent=1 // pred_check_branch
      %48 = sbr.rel (0) target = $region53
    $region52: #{graph_network_forward.1} parent=1 // pred_region
      _
    $region53: #{graph_network_forward.1} parent=1 // pred_fallthru
      _
    // Predicated region
    $region54: #{graph_network_forward.1} parent=1 // pred_check
      _
    $region55: #{graph_network_forward.1} parent=1 // pred_check_branch
      %50 = sbr.rel (0) target = $region57
    $region56: #{graph_network_forward.1} parent=1 // pred_region
      _
    $region57: #{graph_network_forward.1} parent=1 // pred_fallthru
      _
    // Predicated region
    $region58: #{graph_network_forward.1} parent=1 // pred_check
      _
    $region59: #{graph_network_forward.1} parent=1 // pred_check_branch
      %52 = sbr.rel (0) target = $region61
    $region60: #{graph_network_forward.1} parent=1 // pred_region
      _
    $region61: #{graph_network_forward.1} parent=1 // pred_fallthru
      _
    // Predicated region
    $region62: #{graph_network_forward.1} parent=1 // pred_check
      _
    $region63: #{graph_network_forward.1} parent=1 // pred_check_branch
      %54 = sbr.rel (0) target = $region65
    $region64: #{graph_network_forward.1} parent=1 // pred_region
      _
    $region65: #{graph_network_forward.1} parent=1 // pred_fallthru
      _
    // Predicated region
    $region66: #{graph_network_forward.1} parent=1 // pred_check
      _
    $region67: #{graph_network_forward.1} parent=1 // pred_check_branch
      %56 = sbr.rel (0) target = $region69
    $region68: #{graph_network_forward.1} parent=1 // pred_region
      _
    $region69: #{graph_network_forward.1} parent=1 // pred_fallthru
      _
    %v57 = vld [vmem:[%s0] sm:$0xff]
    %v58 = vld [vmem:[%s0 + $0x8] sm:$0xff]
    %v59 = vld [vmem:[%s0 + $0x10] sm:$0xff]
    %v60 = vld [vmem:[%s1] sm:$0xff]
    %v61 = vld [vmem:[%s1 + $0x8] sm:$0xff]
    %v62 = vld [vmem:[%s1 + $0x10] sm:$0xff]
    %vm63 = vcmask 195584
    %v65 = vsel %vm63, %v60, 0
    %v68 = vsel %vm63, %v61, 0
    %v71 = vsel %vm63, %v62, 0
    %73 = vmatpush.msra.mxu0 0.0
    %74 = vmatpush.msra.mxu0 0.0
    %75 = vmatpush.msra.mxu0 0.0
    %76 = vmatpush.msra.mxu0 0.0
    %77 = vmatpush.msra.mxu0 0.0
    %78 = vmatpush.msra.mxu0 0.0
    %79 = vmatpush.msra.mxu0 0.0
    %80 = vmatpush.msra.mxu0 0.0
    %81 = vmatpush.msra.mxu0 0.0
    %82 = vmatpush.msra.mxu0 0.0
    %83 = vmatpush.msra.mxu0 0.0
    %84 = vmatpush.msra.mxu0 0.0
    %85 = vmatpush.msra.mxu0 0.0
    %86 = vmatpush.msra.mxu0 %v59
    %87 = vmatpush.msra.mxu0 %v58
    %88 = vmatpush.msra.mxu0 %v57
    %89 = vmatmul.f32.gmra.mxu0 %v65
    %v90 = vpop.f32.mrf.mxu0
    %v91 = vadd.f32 0.0, %v90
    %92 = vmatmul.f32.gmra.mxu0 %v68
    %v93 = vpop.f32.mrf.mxu0
    %v94 = vadd.f32 0.0, %v93
    %95 = vmatmul.f32.gmra.mxu0 %v71
    %v96 = vpop.f32.mrf.mxu0
    %v97 = vadd.f32 0.0, %v96
    %98 = vdwg.mxu0
    %v99 = vld [vmem:[%s4] sm:$0xff]
    %v100 = vld [vmem:[%s4 + $0x8] sm:$0xff]
    %v101 = vld [vmem:[%s5] sm:$0xff]
    %v102 = vld [vmem:[%s5 + $0x8] sm:$0xff]
    %vm103 = vcmask 130048
    %v105 = vsel %vm103, %v57, 0
    %v108 = vsel %vm103, %v58, 0
    %v111 = vsel %vm103, %v59, 0
    %113 = vmatpush.msra.mxu0 0.0
    %114 = vmatpush.msra.mxu0 0.0
    %115 = vmatpush.msra.mxu0 0.0
    %116 = vmatpush.msra.mxu0 0.0
    %117 = vmatpush.msra.mxu0 0.0
    %118 = vmatpush.msra.mxu0 0.0
    %119 = vmatpush.msra.mxu0 0.0
    %120 = vmatpush.msra.mxu0 0.0
    %121 = vmatpush.msra.mxu0 0.0
    %122 = vmatpush.msra.mxu0 0.0
    %123 = vmatpush.msra.mxu0 0.0
    %124 = vmatpush.msra.mxu0 0.0
    %125 = vmatpush.msra.mxu0 0.0
    %126 = vmatpush.msra.mxu0 0.0
    %127 = vmatpush.msra.mxu0 %v102
    %128 = vmatpush.msra.mxu0 %v101
    %129 = vmatmul.f32.gmra.mxu0 %v105
    %v130 = vpop.f32.mrf.mxu0
    %v131 = vadd.f32 0.0, %v130
    %132 = vmatmul.f32.gmra.mxu0 %v108
    %v133 = vpop.f32.mrf.mxu0
    %v134 = vadd.f32 0.0, %v133
    %135 = vmatmul.f32.gmra.mxu0 %v111
    %v136 = vpop.f32.mrf.mxu0
    %v137 = vadd.f32 0.0, %v136
    %138 = vdwg.mxu0
    %v140 = vsel %vm103, %v91, 0
    %v143 = vsel %vm103, %v94, 0
    %v146 = vsel %vm103, %v97, 0
    %148 = vmatpush.msra.mxu0 0.0
    %149 = vmatpush.msra.mxu0 0.0
    %150 = vmatpush.msra.mxu0 0.0
    %151 = vmatpush.msra.mxu0 0.0
    %152 = vmatpush.msra.mxu0 0.0
    %153 = vmatpush.msra.mxu0 0.0
    %154 = vmatpush.msra.mxu0 0.0
    %155 = vmatpush.msra.mxu0 0.0
    %156 = vmatpush.msra.mxu0 0.0
    %157 = vmatpush.msra.mxu0 0.0
    %158 = vmatpush.msra.mxu0 0.0
    %159 = vmatpush.msra.mxu0 0.0
    %160 = vmatpush.msra.mxu0 0.0
    %161 = vmatpush.msra.mxu0 0.0
    %162 = vmatpush.msra.mxu0 %v100
    %163 = vmatpush.msra.mxu0 %v99
    %164 = vmatmul.f32.gmra.mxu0 %v140
    %v165 = vpop.f32.mrf.mxu0
    %v166 = vadd.f32 %v131, %v165
    %167 = vmatmul.f32.gmra.mxu0 %v143
    %v168 = vpop.f32.mrf.mxu0
    %v169 = vadd.f32 %v134, %v168
    %170 = vmatmul.f32.gmra.mxu0 %v146
    %v171 = vpop.f32.mrf.mxu0
    %v172 = vadd.f32 %v137, %v171
    %173 = vdwg.mxu0
    %v174 = vld [vmem:[%s6] sm:$0x1]
    %v176 = vperm.slane %v174, 0
    %v178 = vadd.f32 %v166, %v176
    %v179 = vadd.f32 %v169, %v176
    %v180 = vadd.f32 %v172, %v176
    %v181 = vmax.f32 %v178, 0.0
    %v182 = vmax.f32 %v179, 0.0
    %v183 = vmax.f32 %v180, 0.0
    %v184 = vld [vmem:[%s8] sm:$0xff]
    %v185 = vld [vmem:[%s8 + $0x8] sm:$0xff]
    %v186 = vld [vmem:[%s8 + $0x10] sm:$0xff]
    %v187 = vld [vmem:[%s8 + $0x18] sm:$0xff]
    %v188 = vld [vmem:[%s9] sm:$0x1]
    %v190 = vperm.slane %v188, 0
    %vm192 = vcmask 261120
    %v194 = vsel %vm192, %v181, 0
    %v197 = vsel %vm192, %v182, 0
    %v200 = vsel %vm192, %v183, 0
    %202 = vmatpush.msra.mxu0 0.0
    %203 = vmatpush.msra.mxu0 0.0
    %204 = vmatpush.msra.mxu0 0.0
    %205 = vmatpush.msra.mxu0 0.0
    %206 = vmatpush.msra.mxu0 0.0
    %207 = vmatpush.msra.mxu0 0.0
    %208 = vmatpush.msra.mxu0 0.0
    %209 = vmatpush.msra.mxu0 0.0
    %210 = vmatpush.msra.mxu0 0.0
    %211 = vmatpush.msra.mxu0 0.0
    %212 = vmatpush.msra.mxu0 0.0
    %213 = vmatpush.msra.mxu0 0.0
    %214 = vmatpush.msra.mxu0 %v187
    %215 = vmatpush.msra.mxu0 %v186
    %216 = vmatpush.msra.mxu0 %v185
    %217 = vmatpush.msra.mxu0 %v184
    %218 = vmatmul.f32.gmra.mxu0 %v194
    %v219 = vpop.f32.mrf.mxu0
    %v220 = vadd.f32 %v190, %v219
    %221 = vmatmul.f32.gmra.mxu0 %v197
    %v222 = vpop.f32.mrf.mxu0
    %v223 = vadd.f32 %v190, %v222
    %224 = vmatmul.f32.gmra.mxu0 %v200
    %v225 = vpop.f32.mrf.mxu0
    %v226 = vadd.f32 %v190, %v225
    %227 = vdwg.mxu0
    %v228 = vld [vmem:[%s2] sm:$0xff]
    %v229 = vld [vmem:[%s2 + $0x8] sm:$0xff]
    %v230 = vld [vmem:[%s2 + $0x10] sm:$0xff]
    %v231 = vsel %vm63, %v228, 0.0
    %232 = vadd.xlane.f32.xlu0 %v231
    %v233 = vpop.xlane.xlu0 %232
    %v234 = vsel %vm63, %v229, 0.0
    %235 = vadd.xlane.f32.xlu0 %v234
    %v236 = vpop.xlane.xlu0 %235
    %v237 = vsel %vm63, %v230, 0.0
    %238 = vadd.xlane.f32.xlu0 %v237
    %v239 = vpop.xlane.xlu0 %238
    %v241 = vsel %vm63, %v228, 0
    %v244 = vsel %vm63, %v229, 0
    %v247 = vsel %vm63, %v230, 0
    %249 = vmatpush.msra.mxu0 0.0
    %250 = vmatpush.msra.mxu0 0.0
    %251 = vmatpush.msra.mxu0 0.0
    %252 = vmatpush.msra.mxu0 0.0
    %253 = vmatpush.msra.mxu0 0.0
    %254 = vmatpush.msra.mxu0 0.0
    %255 = vmatpush.msra.mxu0 0.0
    %256 = vmatpush.msra.mxu0 0.0
    %257 = vmatpush.msra.mxu0 0.0
    %258 = vmatpush.msra.mxu0 0.0
    %259 = vmatpush.msra.mxu0 0.0
    %260 = vmatpush.msra.mxu0 0.0
    %261 = vmatpush.msra.mxu0 0.0
    %262 = vmatpush.msra.mxu0 %v183
    %263 = vmatpush.msra.mxu0 %v182
    %264 = vmatpush.msra.mxu0 %v181
    %265 = vmatmul.f32.gmra.mxu0 %v241
    %v266 = vpop.f32.mrf.mxu0
    %v267 = vadd.f32 0.0, %v266
    %268 = vmatmul.f32.gmra.mxu0 %v244
    %v269 = vpop.f32.mrf.mxu0
    %v270 = vadd.f32 0.0, %v269
    %271 = vmatmul.f32.gmra.mxu0 %v247
    %v272 = vpop.f32.mrf.mxu0
    %v273 = vadd.f32 0.0, %v272
    %274 = vdwg.mxu0
    %v275 = vmax.f32 %v233, 1.0
    %v276 = vmax.f32 %v236, 1.0
    %v277 = vmax.f32 %v239, 1.0
    %v278 = vrcp.pop %v275
    %v279 = vmul.f32 %v275, %v278
    %v280 = vsub.f32 1.0, %v279
    %v281 = vmul.f32 %v278, %v280
    %v282 = vadd.f32 %v278, %v281
    %vm283 = vweird.f32 %v275
    %vm284 = vweird.f32 %v278
    %vm285 = vmor %vm283, %vm284
    %v286 = vsel %vm285, %v278, %v282
    %v287 = vand.u32 2147483647, %v275
    %vm288 = vcmp.eq.f32.partialorder %v287, 8.507059e+37
    %v289 = vand.u32 %v275, 2147483648
    %v290 = vor.u32 1.1754944e-38, %v289
    %v291 = vsel %vm288, %v290, %v286
    %v292 = vmul.f32 %v267, %v291
    %v293 = vrcp.pop %v276
    %v294 = vmul.f32 %v276, %v293
    %v295 = vsub.f32 1.0, %v294
    %v296 = vmul.f32 %v293, %v295
    %v297 = vadd.f32 %v293, %v296
    %vm298 = vweird.f32 %v276
    %vm299 = vweird.f32 %v293
    %vm300 = vmor %vm298, %vm299
    %v301 = vsel %vm300, %v293, %v297
    %v302 = vand.u32 2147483647, %v276
    %vm303 = vcmp.eq.f32.partialorder %v302, 8.507059e+37
    %v304 = vand.u32 %v276, 2147483648
    %v305 = vor.u32 1.1754944e-38, %v304
    %v306 = vsel %vm303, %v305, %v301
    %v307 = vmul.f32 %v270, %v306
    %v308 = vrcp.pop %v277
    %v309 = vmul.f32 %v277, %v308
    %v310 = vsub.f32 1.0, %v309
    %v311 = vmul.f32 %v308, %v310
    %v312 = vadd.f32 %v308, %v311
    %vm313 = vweird.f32 %v277
    %vm314 = vweird.f32 %v308
    %vm315 = vmor %vm313, %vm314
    %v316 = vsel %vm315, %v308, %v312
    %v317 = vand.u32 2147483647, %v277
    %vm318 = vcmp.eq.f32.partialorder %v317, 8.507059e+37
    %v319 = vand.u32 %v277, 2147483648
    %v320 = vor.u32 1.1754944e-38, %v319
    %v321 = vsel %vm318, %v320, %v316
    %v322 = vmul.f32 %v273, %v321
    %v323 = vld [vmem:[%s7] sm:$0xff]
    %v324 = vld [vmem:[%s7 + $0x8] sm:$0xff]
    %v325 = vld [vmem:[%s7 + $0x10] sm:$0xff]
    %v326 = vld [vmem:[%s7 + $0x18] sm:$0xff]
    %v328 = vsel %vm192, %v292, 0
    %v331 = vsel %vm192, %v307, 0
    %v334 = vsel %vm192, %v322, 0
    %336 = vmatpush.msra.mxu0 0.0
    %337 = vmatpush.msra.mxu0 0.0
    %338 = vmatpush.msra.mxu0 0.0
    %339 = vmatpush.msra.mxu0 0.0
    %340 = vmatpush.msra.mxu0 0.0
    %341 = vmatpush.msra.mxu0 0.0
    %342 = vmatpush.msra.mxu0 0.0
    %343 = vmatpush.msra.mxu0 0.0
    %344 = vmatpush.msra.mxu0 0.0
    %345 = vmatpush.msra.mxu0 0.0
    %346 = vmatpush.msra.mxu0 0.0
    %347 = vmatpush.msra.mxu0 0.0
    %348 = vmatpush.msra.mxu0 %v326
    %349 = vmatpush.msra.mxu0 %v325
    %350 = vmatpush.msra.mxu0 %v324
    %351 = vmatpush.msra.mxu0 %v323
    %352 = vmatmul.f32.gmra.mxu0 %v328
    %v353 = vpop.f32.mrf.mxu0
    %v354 = vadd.f32 0.0, %v353
    %355 = vmatmul.f32.gmra.mxu0 %v331
    %v356 = vpop.f32.mrf.mxu0
    %v357 = vadd.f32 0.0, %v356
    %358 = vmatmul.f32.gmra.mxu0 %v334
    %v359 = vpop.f32.mrf.mxu0
    %v360 = vadd.f32 0.0, %v359
    %361 = vdwg.mxu0
    %v362 = vadd.f32 %v220, %v354
    %v363 = vadd.f32 %v223, %v357
    %v364 = vadd.f32 %v226, %v360
    %s365 = scalar_lea.vmem %s2, 24
    %v366 = vld [vmem:[%s365] sm:$0xff]
    %v367 = vld [vmem:[%s365 + $0x8] sm:$0xff]
    %v368 = vld [vmem:[%s365 + $0x10] sm:$0xff]
    %v369 = vsel %vm63, %v366, 0.0
    %370 = vadd.xlane.f32.xlu0 %v369
    %v371 = vpop.xlane.xlu0 %370
    %v372 = vsel %vm63, %v367, 0.0
    %373 = vadd.xlane.f32.xlu0 %v372
    %v374 = vpop.xlane.xlu0 %373
    %v375 = vsel %vm63, %v368, 0.0
    %376 = vadd.xlane.f32.xlu0 %v375
    %v377 = vpop.xlane.xlu0 %376
    %v379 = vsel %vm63, %v366, 0
    %v382 = vsel %vm63, %v367, 0
    %v385 = vsel %vm63, %v368, 0
    %387 = vmatpush.msra.mxu0 0.0
    %388 = vmatpush.msra.mxu0 0.0
    %389 = vmatpush.msra.mxu0 0.0
    %390 = vmatpush.msra.mxu0 0.0
    %391 = vmatpush.msra.mxu0 0.0
    %392 = vmatpush.msra.mxu0 0.0
    %393 = vmatpush.msra.mxu0 0.0
    %394 = vmatpush.msra.mxu0 0.0
    %395 = vmatpush.msra.mxu0 0.0
    %396 = vmatpush.msra.mxu0 0.0
    %397 = vmatpush.msra.mxu0 0.0
    %398 = vmatpush.msra.mxu0 0.0
    %399 = vmatpush.msra.mxu0 0.0
    %400 = vmatpush.msra.mxu0 %v183
    %401 = vmatpush.msra.mxu0 %v182
    %402 = vmatpush.msra.mxu0 %v181
    %403 = vmatmul.f32.gmra.mxu0 %v379
    %v404 = vpop.f32.mrf.mxu0
    %v405 = vadd.f32 0.0, %v404
    %406 = vmatmul.f32.gmra.mxu0 %v382
    %v407 = vpop.f32.mrf.mxu0
    %v408 = vadd.f32 0.0, %v407
    %409 = vmatmul.f32.gmra.mxu0 %v385
    %v410 = vpop.f32.mrf.mxu0
    %v411 = vadd.f32 0.0, %v410
    %412 = vdwg.mxu0
    %v413 = vmax.f32 %v371, 1.0
    %v414 = vmax.f32 %v374, 1.0
    %v415 = vmax.f32 %v377, 1.0
    %v416 = vrcp.pop %v413
    %v417 = vmul.f32 %v413, %v416
    %v418 = vsub.f32 1.0, %v417
    %v419 = vmul.f32 %v416, %v418
    %v420 = vadd.f32 %v416, %v419
    %vm421 = vweird.f32 %v413
    %vm422 = vweird.f32 %v416
    %vm423 = vmor %vm421, %vm422
    %v424 = vsel %vm423, %v416, %v420
    %v425 = vand.u32 2147483647, %v413
    %vm426 = vcmp.eq.f32.partialorder %v425, 8.507059e+37
    %v427 = vand.u32 %v413, 2147483648
    %v428 = vor.u32 1.1754944e-38, %v427
    %v429 = vsel %vm426, %v428, %v424
    %v430 = vmul.f32 %v405, %v429
    %v431 = vrcp.pop %v414
    %v432 = vmul.f32 %v414, %v431
    %v433 = vsub.f32 1.0, %v432
    %v434 = vmul.f32 %v431, %v433
    %v435 = vadd.f32 %v431, %v434
    %vm436 = vweird.f32 %v414
    %vm437 = vweird.f32 %v431
    %vm438 = vmor %vm436, %vm437
    %v439 = vsel %vm438, %v431, %v435
    %v440 = vand.u32 2147483647, %v414
    %vm441 = vcmp.eq.f32.partialorder %v440, 8.507059e+37
    %v442 = vand.u32 %v414, 2147483648
    %v443 = vor.u32 1.1754944e-38, %v442
    %v444 = vsel %vm441, %v443, %v439
    %v445 = vmul.f32 %v408, %v444
    %v446 = vrcp.pop %v415
    %v447 = vmul.f32 %v415, %v446
    %v448 = vsub.f32 1.0, %v447
    %v449 = vmul.f32 %v446, %v448
    %v450 = vadd.f32 %v446, %v449
    %vm451 = vweird.f32 %v415
    %vm452 = vweird.f32 %v446
    %vm453 = vmor %vm451, %vm452
    %v454 = vsel %vm453, %v446, %v450
    %v455 = vand.u32 2147483647, %v415
    %vm456 = vcmp.eq.f32.partialorder %v455, 8.507059e+37
    %v457 = vand.u32 %v415, 2147483648
    %v458 = vor.u32 1.1754944e-38, %v457
    %v459 = vsel %vm456, %v458, %v454
    %v460 = vmul.f32 %v411, %v459
    %s461 = scalar_lea.vmem %s7, 32
    %v462 = vld [vmem:[%s461] sm:$0xff]
    %v463 = vld [vmem:[%s461 + $0x8] sm:$0xff]
    %v464 = vld [vmem:[%s461 + $0x10] sm:$0xff]
    %v465 = vld [vmem:[%s461 + $0x18] sm:$0xff]
    %v467 = vsel %vm192, %v430, 0
    %v470 = vsel %vm192, %v445, 0
    %v473 = vsel %vm192, %v460, 0
    %475 = vmatpush.msra.mxu0 0.0
    %476 = vmatpush.msra.mxu0 0.0
    %477 = vmatpush.msra.mxu0 0.0
    %478 = vmatpush.msra.mxu0 0.0
    %479 = vmatpush.msra.mxu0 0.0
    %480 = vmatpush.msra.mxu0 0.0
    %481 = vmatpush.msra.mxu0 0.0
    %482 = vmatpush.msra.mxu0 0.0
    %483 = vmatpush.msra.mxu0 0.0
    %484 = vmatpush.msra.mxu0 0.0
    %485 = vmatpush.msra.mxu0 0.0
    %486 = vmatpush.msra.mxu0 0.0
    %487 = vmatpush.msra.mxu0 %v465
    %488 = vmatpush.msra.mxu0 %v464
    %489 = vmatpush.msra.mxu0 %v463
    %490 = vmatpush.msra.mxu0 %v462
    %491 = vmatmul.f32.gmra.mxu0 %v467
    %v492 = vpop.f32.mrf.mxu0
    %v493 = vadd.f32 0.0, %v492
    %494 = vmatmul.f32.gmra.mxu0 %v470
    %v495 = vpop.f32.mrf.mxu0
    %v496 = vadd.f32 0.0, %v495
    %497 = vmatmul.f32.gmra.mxu0 %v473
    %v498 = vpop.f32.mrf.mxu0
    %v499 = vadd.f32 0.0, %v498
    %500 = vdwg.mxu0
    %v501 = vadd.f32 %v362, %v493
    %v502 = vadd.f32 %v363, %v496
    %v503 = vadd.f32 %v364, %v499
    %s504 = scalar_lea.vmem %s2, 48
    %v505 = vld [vmem:[%s504] sm:$0xff]
    %v506 = vld [vmem:[%s504 + $0x8] sm:$0xff]
    %v507 = vld [vmem:[%s504 + $0x10] sm:$0xff]
    %v508 = vsel %vm63, %v505, 0.0
    %509 = vadd.xlane.f32.xlu0 %v508
    %v510 = vpop.xlane.xlu0 %509
    %v511 = vsel %vm63, %v506, 0.0
    %512 = vadd.xlane.f32.xlu0 %v511
    %v513 = vpop.xlane.xlu0 %512
    %v514 = vsel %vm63, %v507, 0.0
    %515 = vadd.xlane.f32.xlu0 %v514
    %v516 = vpop.xlane.xlu0 %515
    %v518 = vsel %vm63, %v505, 0
    %v521 = vsel %vm63, %v506, 0
    %v524 = vsel %vm63, %v507, 0
    %526 = vmatpush.msra.mxu0 0.0
    %527 = vmatpush.msra.mxu0 0.0
    %528 = vmatpush.msra.mxu0 0.0
    %529 = vmatpush.msra.mxu0 0.0
    %530 = vmatpush.msra.mxu0 0.0
    %531 = vmatpush.msra.mxu0 0.0
    %532 = vmatpush.msra.mxu0 0.0
    %533 = vmatpush.msra.mxu0 0.0
    %534 = vmatpush.msra.mxu0 0.0
    %535 = vmatpush.msra.mxu0 0.0
    %536 = vmatpush.msra.mxu0 0.0
    %537 = vmatpush.msra.mxu0 0.0
    %538 = vmatpush.msra.mxu0 0.0
    %539 = vmatpush.msra.mxu0 %v183
    %540 = vmatpush.msra.mxu0 %v182
    %541 = vmatpush.msra.mxu0 %v181
    %542 = vmatmul.f32.gmra.mxu0 %v518
    %v543 = vpop.f32.mrf.mxu0
    %v544 = vadd.f32 0.0, %v543
    %545 = vmatmul.f32.gmra.mxu0 %v521
    %v546 = vpop.f32.mrf.mxu0
    %v547 = vadd.f32 0.0, %v546
    %548 = vmatmul.f32.gmra.mxu0 %v524
    %v549 = vpop.f32.mrf.mxu0
    %v550 = vadd.f32 0.0, %v549
    %551 = vdwg.mxu0
    %v552 = vmax.f32 %v510, 1.0
    %v553 = vmax.f32 %v513, 1.0
    %v554 = vmax.f32 %v516, 1.0
    %v555 = vrcp.pop %v552
    %v556 = vmul.f32 %v552, %v555
    %v557 = vsub.f32 1.0, %v556
    %v558 = vmul.f32 %v555, %v557
    %v559 = vadd.f32 %v555, %v558
    %vm560 = vweird.f32 %v552
    %vm561 = vweird.f32 %v555
    %vm562 = vmor %vm560, %vm561
    %v563 = vsel %vm562, %v555, %v559
    %v564 = vand.u32 2147483647, %v552
    %vm565 = vcmp.eq.f32.partialorder %v564, 8.507059e+37
    %v566 = vand.u32 %v552, 2147483648
    %v567 = vor.u32 1.1754944e-38, %v566
    %v568 = vsel %vm565, %v567, %v563
    %v569 = vmul.f32 %v544, %v568
    %v570 = vrcp.pop %v553
    %v571 = vmul.f32 %v553, %v570
    %v572 = vsub.f32 1.0, %v571
    %v573 = vmul.f32 %v570, %v572
    %v574 = vadd.f32 %v570, %v573
    %vm575 = vweird.f32 %v553
    %vm576 = vweird.f32 %v570
    %vm577 = vmor %vm575, %vm576
    %v578 = vsel %vm577, %v570, %v574
    %v579 = vand.u32 2147483647, %v553
    %vm580 = vcmp.eq.f32.partialorder %v579, 8.507059e+37
    %v581 = vand.u32 %v553, 2147483648
    %v582 = vor.u32 1.1754944e-38, %v581
    %v583 = vsel %vm580, %v582, %v578
    %v584 = vmul.f32 %v547, %v583
    %v585 = vrcp.pop %v554
    %v586 = vmul.f32 %v554, %v585
    %v587 = vsub.f32 1.0, %v586
    %v588 = vmul.f32 %v585, %v587
    %v589 = vadd.f32 %v585, %v588
    %vm590 = vweird.f32 %v554
    %vm591 = vweird.f32 %v585
    %vm592 = vmor %vm590, %vm591
    %v593 = vsel %vm592, %v585, %v589
    %v594 = vand.u32 2147483647, %v554
    %vm595 = vcmp.eq.f32.partialorder %v594, 8.507059e+37
    %v596 = vand.u32 %v554, 2147483648
    %v597 = vor.u32 1.1754944e-38, %v596
    %v598 = vsel %vm595, %v597, %v593
    %v599 = vmul.f32 %v550, %v598
    %s600 = scalar_lea.vmem %s7, 64
    %v601 = vld [vmem:[%s600] sm:$0xff]
    %v602 = vld [vmem:[%s600 + $0x8] sm:$0xff]
    %v603 = vld [vmem:[%s600 + $0x10] sm:$0xff]
    %v604 = vld [vmem:[%s600 + $0x18] sm:$0xff]
    %v606 = vsel %vm192, %v569, 0
    %v609 = vsel %vm192, %v584, 0
    %v612 = vsel %vm192, %v599, 0
    %614 = vmatpush.msra.mxu0 0.0
    %615 = vmatpush.msra.mxu0 0.0
    %616 = vmatpush.msra.mxu0 0.0
    %617 = vmatpush.msra.mxu0 0.0
    %618 = vmatpush.msra.mxu0 0.0
    %619 = vmatpush.msra.mxu0 0.0
    %620 = vmatpush.msra.mxu0 0.0
    %621 = vmatpush.msra.mxu0 0.0
    %622 = vmatpush.msra.mxu0 0.0
    %623 = vmatpush.msra.mxu0 0.0
    %624 = vmatpush.msra.mxu0 0.0
    %625 = vmatpush.msra.mxu0 0.0
    %626 = vmatpush.msra.mxu0 %v604
    %627 = vmatpush.msra.mxu0 %v603
    %628 = vmatpush.msra.mxu0 %v602
    %629 = vmatpush.msra.mxu0 %v601
    %630 = vmatmul.f32.gmra.mxu0 %v606
    %v631 = vpop.f32.mrf.mxu0
    %v632 = vadd.f32 0.0, %v631
    %633 = vmatmul.f32.gmra.mxu0 %v609
    %v634 = vpop.f32.mrf.mxu0
    %v635 = vadd.f32 0.0, %v634
    %636 = vmatmul.f32.gmra.mxu0 %v612
    %v637 = vpop.f32.mrf.mxu0
    %v638 = vadd.f32 0.0, %v637
    %639 = vdwg.mxu0
    %v640 = vadd.f32 %v501, %v632
    %v641 = vadd.f32 %v502, %v635
    %v642 = vadd.f32 %v503, %v638
    %v643 = vmax.f32 %v640, 0.0
    %v644 = vmax.f32 %v641, 0.0
    %v645 = vmax.f32 %v642, 0.0
    %v646 = vld [vmem:[%s3] sm:$0x3]
    %v648 = vsel %vm63, %v646, 0
    %650 = vmatpush.msra.mxu0 0.0
    %651 = vmatpush.msra.mxu0 0.0
    %652 = vmatpush.msra.mxu0 0.0
    %653 = vmatpush.msra.mxu0 0.0
    %654 = vmatpush.msra.mxu0 0.0
    %655 = vmatpush.msra.mxu0 0.0
    %656 = vmatpush.msra.mxu0 0.0
    %657 = vmatpush.msra.mxu0 0.0
    %658 = vmatpush.msra.mxu0 0.0
    %659 = vmatpush.msra.mxu0 0.0
    %660 = vmatpush.msra.mxu0 0.0
    %661 = vmatpush.msra.mxu0 0.0
    %662 = vmatpush.msra.mxu0 0.0
    %663 = vmatpush.msra.mxu0 %v59
    %664 = vmatpush.msra.mxu0 %v58
    %665 = vmatpush.msra.mxu0 %v57
    %666 = vmatmul.f32.gmra.mxu0 %v648
    %v667 = vpop.f32.mrf.mxu0
    %v668 = vadd.f32 0.0, %v667
    %669 = vdwg.mxu0
    %670 = vmatpush.msra.mxu0 0.0
    %671 = vmatpush.msra.mxu0 0.0
    %672 = vmatpush.msra.mxu0 0.0
    %673 = vmatpush.msra.mxu0 0.0
    %674 = vmatpush.msra.mxu0 0.0
    %675 = vmatpush.msra.mxu0 0.0
    %676 = vmatpush.msra.mxu0 0.0
    %677 = vmatpush.msra.mxu0 0.0
    %678 = vmatpush.msra.mxu0 0.0
    %679 = vmatpush.msra.mxu0 0.0
    %680 = vmatpush.msra.mxu0 0.0
    %681 = vmatpush.msra.mxu0 0.0
    %682 = vmatpush.msra.mxu0 0.0
    %683 = vmatpush.msra.mxu0 %v645
    %684 = vmatpush.msra.mxu0 %v644
    %685 = vmatpush.msra.mxu0 %v643
    %686 = vmatmul.f32.gmra.mxu0 %v648
    %v687 = vpop.f32.mrf.mxu0
    %v688 = vadd.f32 0.0, %v687
    %689 = vdwg.mxu0
    %v690 = vperm.slane %v646, 0
    %v691 = vlaneseq
    %v692 = vshrl.u32 %v691, 7
    %694 = vset.pattern.permute.xlu0 %v692
    %695 = vperm.xlu0 %694, %v690
    %v696 = vpop.permute.xlu0 %695
    %v697 = vlaneseq
    %v698 = vshrl.u32 %v697, 7
    %v699 = vadd.s32 %v698, 8
    %700 = vset.pattern.permute.xlu0 %v699
    %701 = vperm.xlu0 %700, %v690
    %v702 = vpop.permute.xlu0 %701
    %v703 = vlaneseq
    %v704 = vshrl.u32 %v703, 7
    %v705 = vadd.s32 %v704, 16
    %706 = vset.pattern.permute.xlu0 %v705
    %707 = vperm.xlu0 %706, %v690
    %v708 = vpop.permute.xlu0 %707
    %v709 = vperm.slane %v646, 1
    %v710 = vlaneseq
    %v711 = vshrl.u32 %v710, 7
    %713 = vset.pattern.permute.xlu0 %v711
    %714 = vperm.xlu0 %713, %v709
    %v715 = vpop.permute.xlu0 %714
    %v716 = vlaneseq
    %v717 = vshrl.u32 %v716, 7
    %v718 = vadd.s32 %v717, 8
    %719 = vset.pattern.permute.xlu0 %v718
    %720 = vperm.xlu0 %719, %v709
    %v721 = vpop.permute.xlu0 %720
    %v722 = vlaneseq
    %v723 = vshrl.u32 %v722, 7
    %v724 = vadd.s32 %v723, 16
    %725 = vset.pattern.permute.xlu0 %v724
    %726 = vperm.xlu0 %725, %v709
    %v727 = vpop.permute.xlu0 %726
    %vm728 = vcmp.gt.f32.partialorder %v696, 0.0
    %vm729 = vcmp.gt.f32.partialorder %v702, 0.0
    %vm730 = vcmp.gt.f32.partialorder %v708, 0.0
    %vm731 = vcmp.gt.f32.partialorder %v715, 0.0
    %vm732 = vcmp.gt.f32.partialorder %v721, 0.0
    %vm733 = vcmp.gt.f32.partialorder %v727, 0.0
    %v734 = vsel %vm728, 1, 0
    %v735 = vsel %vm729, 1, 0
    %v736 = vsel %vm730, 1, 0
    %v737 = vsel %vm731, 1, 0
    %v738 = vsel %vm732, 1, 0
    %v739 = vsel %vm733, 1, 0
    %vm740 = vcmp.eq.s32.totalorder %v734, 1
    %vm741 = vcmp.eq.s32.totalorder %v735, 1
    %vm742 = vcmp.eq.s32.totalorder %v736, 1
    %vm743 = vcmp.eq.s32.totalorder %v737, 1
    %vm744 = vcmp.eq.s32.totalorder %v738, 1
    %vm745 = vcmp.eq.s32.totalorder %v739, 1
    %v746 = vsel %vm740, %v57, -1e+30
    %v747 = vsel %vm741, %v58, -1e+30
    %v748 = vsel %vm742, %v59, -1e+30
    %v749 = vsel %vm743, %v57, -1e+30
    %v750 = vsel %vm744, %v58, -1e+30
    %v751 = vsel %vm745, %v59, -1e+30
    %v752 = vsel %vm103, %v746, -inf
    %v753 = vsel %vm103, %v747, -inf
    %v754 = vsel %vm103, %v748, -inf
    %v755 = vmax.f32 %v752, %v754
    %v756 = vmax.f32 %v755, %v753
    %v757 = vrot.slane %v756, 4
    %v758 = vmax.f32 %v756, %v757
    %v759 = vrot.slane %v758, 2
    %v760 = vmax.f32 %v758, %v759
    %v761 = vrot.slane %v760, 1
    %v762 = vmax.f32 %v760, %v761
    %v763 = vsel %vm103, %v749, -inf
    %v764 = vsel %vm103, %v750, -inf
    %v765 = vsel %vm103, %v751, -inf
    %v766 = vmax.f32 %v763, %v765
    %v767 = vmax.f32 %v766, %v764
    %v768 = vrot.slane %v767, 4
    %v769 = vmax.f32 %v767, %v768
    %v770 = vrot.slane %v769, 2
    %v771 = vmax.f32 %v769, %v770
    %v772 = vrot.slane %v771, 1
    %v773 = vmax.f32 %v771, %v772
    %v774 = vsel %vm740, %v643, -1e+30
    %v775 = vsel %vm741, %v644, -1e+30
    %v776 = vsel %vm742, %v645, -1e+30
    %v777 = vsel %vm743, %v643, -1e+30
    %v778 = vsel %vm744, %v644, -1e+30
    %v779 = vsel %vm745, %v645, -1e+30
    %v780 = vsel %vm192, %v774, -inf
    %v781 = vsel %vm192, %v775, -inf
    %v782 = vsel %vm192, %v776, -inf
    %v783 = vmax.f32 %v780, %v782
    %v784 = vmax.f32 %v783, %v781
    %v785 = vrot.slane %v784, 4
    %v786 = vmax.f32 %v784, %v785
    %v787 = vrot.slane %v786, 2
    %v788 = vmax.f32 %v786, %v787
    %v789 = vrot.slane %v788, 1
    %v790 = vmax.f32 %v788, %v789
    %v791 = vsel %vm192, %v777, -inf
    %v792 = vsel %vm192, %v778, -inf
    %v793 = vsel %vm192, %v779, -inf
    %v794 = vmax.f32 %v791, %v793
    %v795 = vmax.f32 %v794, %v792
    %v796 = vrot.slane %v795, 4
    %v797 = vmax.f32 %v795, %v796
    %v798 = vrot.slane %v797, 2
    %v799 = vmax.f32 %v797, %v798
    %v800 = vrot.slane %v799, 1
    %v801 = vmax.f32 %v799, %v800
    %v802 = vld [vmem:[%s10] sm:$0xff]
    %v803 = vld [vmem:[%s10 + $0x8] sm:$0xff]
    %v804 = vld [vmem:[%s11] sm:$0xff]
    %v805 = vld [vmem:[%s11 + $0x8] sm:$0xff]
    %v806 = vld [vmem:[%s11 + $0x10] sm:$0xff]
    %v807 = vld [vmem:[%s11 + $0x18] sm:$0xff]
    %v809 = vsel %vm192, %v688, 0
    %811 = vmatpush.msra.mxu0 0.0
    %812 = vmatpush.msra.mxu0 0.0
    %813 = vmatpush.msra.mxu0 0.0
    %814 = vmatpush.msra.mxu0 0.0
    %815 = vmatpush.msra.mxu0 0.0
    %816 = vmatpush.msra.mxu0 0.0
    %817 = vmatpush.msra.mxu0 0.0
    %818 = vmatpush.msra.mxu0 0.0
    %819 = vmatpush.msra.mxu0 0.0
    %820 = vmatpush.msra.mxu0 0.0
    %821 = vmatpush.msra.mxu0 0.0
    %822 = vmatpush.msra.mxu0 0.0
    %823 = vmatpush.msra.mxu0 %v807
    %824 = vmatpush.msra.mxu0 %v806
    %825 = vmatpush.msra.mxu0 %v805
    %826 = vmatpush.msra.mxu0 %v804
    %827 = vmatmul.f32.gmra.mxu0 %v809
    %v828 = vpop.f32.mrf.mxu0
    %v829 = vadd.f32 0.0, %v828
    %830 = vdwg.mxu0
    %v832 = vsel %vm103, %v668, 0
    %834 = vmatpush.msra.mxu0 0.0
    %835 = vmatpush.msra.mxu0 0.0
    %836 = vmatpush.msra.mxu0 0.0
    %837 = vmatpush.msra.mxu0 0.0
    %838 = vmatpush.msra.mxu0 0.0
    %839 = vmatpush.msra.mxu0 0.0
    %840 = vmatpush.msra.mxu0 0.0
    %841 = vmatpush.msra.mxu0 0.0
    %842 = vmatpush.msra.mxu0 0.0
    %843 = vmatpush.msra.mxu0 0.0
    %844 = vmatpush.msra.mxu0 0.0
    %845 = vmatpush.msra.mxu0 0.0
    %846 = vmatpush.msra.mxu0 0.0
    %847 = vmatpush.msra.mxu0 0.0
    %848 = vmatpush.msra.mxu0 %v803
    %849 = vmatpush.msra.mxu0 %v802
    %850 = vmatmul.f32.gmra.mxu0 %v832
    %v851 = vpop.f32.mrf.mxu0
    %v852 = vadd.f32 %v829, %v851
    %853 = vdwg.mxu0
    %v854 = vld [vmem:[%s12] sm:$0xff]
    %v855 = vld [vmem:[%s12 + $0x8] sm:$0xff]
    %vm858 = vcmask 1041409
    %v859 = vsel %vm858, %v773, %v762
    %v860 = vsel %vm103, %v859, 0
    %862 = vmatpush.msra.mxu0 0.0
    %863 = vmatpush.msra.mxu0 0.0
    %864 = vmatpush.msra.mxu0 0.0
    %865 = vmatpush.msra.mxu0 0.0
    %866 = vmatpush.msra.mxu0 0.0
    %867 = vmatpush.msra.mxu0 0.0
    %868 = vmatpush.msra.mxu0 0.0
    %869 = vmatpush.msra.mxu0 0.0
    %870 = vmatpush.msra.mxu0 0.0
    %871 = vmatpush.msra.mxu0 0.0
    %872 = vmatpush.msra.mxu0 0.0
    %873 = vmatpush.msra.mxu0 0.0
    %874 = vmatpush.msra.mxu0 0.0
    %875 = vmatpush.msra.mxu0 0.0
    %876 = vmatpush.msra.mxu0 %v855
    %877 = vmatpush.msra.mxu0 %v854
    %878 = vmatmul.f32.gmra.mxu0 %v860
    %v879 = vpop.f32.mrf.mxu0
    %v880 = vadd.f32 0.0, %v879
    %881 = vdwg.mxu0
    %v882 = vadd.f32 %v852, %v880
    %v883 = vld [vmem:[%s13] sm:$0xff]
    %v884 = vld [vmem:[%s13 + $0x8] sm:$0xff]
    %v885 = vld [vmem:[%s13 + $0x10] sm:$0xff]
    %v886 = vld [vmem:[%s13 + $0x18] sm:$0xff]
    %v889 = vsel %vm858, %v801, %v790
    %v890 = vsel %vm192, %v889, 0
    %892 = vmatpush.msra.mxu0 0.0
    %893 = vmatpush.msra.mxu0 0.0
    %894 = vmatpush.msra.mxu0 0.0
    %895 = vmatpush.msra.mxu0 0.0
    %896 = vmatpush.msra.mxu0 0.0
    %897 = vmatpush.msra.mxu0 0.0
    %898 = vmatpush.msra.mxu0 0.0
    %899 = vmatpush.msra.mxu0 0.0
    %900 = vmatpush.msra.mxu0 0.0
    %901 = vmatpush.msra.mxu0 0.0
    %902 = vmatpush.msra.mxu0 0.0
    %903 = vmatpush.msra.mxu0 0.0
    %904 = vmatpush.msra.mxu0 %v886
    %905 = vmatpush.msra.mxu0 %v885
    %906 = vmatpush.msra.mxu0 %v884
    %907 = vmatpush.msra.mxu0 %v883
    %908 = vmatmul.f32.gmra.mxu0 %v890
    %v909 = vpop.f32.mrf.mxu0
    %v910 = vadd.f32 0.0, %v909
    %911 = vdwg.mxu0
    %v912 = vadd.f32 %v882, %v910
    %v913 = vld [vmem:[%s14] sm:$0x1]
    %v915 = vperm.slane %v913, 0
    %v917 = vadd.f32 %v912, %v915
    %v918 = vmax.f32 %v917, 0.0
    %v919 = vld [vmem:[%s15] sm:$0xff]
    %v920 = vld [vmem:[%s15 + $0x8] sm:$0xff]
    %v921 = vld [vmem:[%s15 + $0x10] sm:$0xff]
    %v922 = vld [vmem:[%s15 + $0x18] sm:$0xff]
    %v923 = vld [vmem:[%s16] sm:$0x1]
    %v925 = vperm.slane %v923, 0
    %v928 = vsel %vm192, %v918, 0
    %930 = vmatpush.msra.mxu0 0.0
    %931 = vmatpush.msra.mxu0 0.0
    %932 = vmatpush.msra.mxu0 0.0
    %933 = vmatpush.msra.mxu0 0.0
    %934 = vmatpush.msra.mxu0 0.0
    %935 = vmatpush.msra.mxu0 0.0
    %936 = vmatpush.msra.mxu0 0.0
    %937 = vmatpush.msra.mxu0 0.0
    %938 = vmatpush.msra.mxu0 0.0
    %939 = vmatpush.msra.mxu0 0.0
    %940 = vmatpush.msra.mxu0 0.0
    %941 = vmatpush.msra.mxu0 0.0
    %942 = vmatpush.msra.mxu0 %v922
    %943 = vmatpush.msra.mxu0 %v921
    %944 = vmatpush.msra.mxu0 %v920
    %945 = vmatpush.msra.mxu0 %v919
    %946 = vmatmul.f32.gmra.mxu0 %v928
    %v947 = vpop.f32.mrf.mxu0
    %v948 = vadd.f32 %v925, %v947
    %949 = vdwg.mxu0
    %vm950 = vcmask 33792
    %v951 = vsel %vm950, %v948, -inf
    %952 = vmax.xlane.f32.xlu0 %v951
    %v953 = vpop.xlane.xlu0 %952
    %v954 = vsub.f32 %v948, %v953
    %v955 = vmul.f32 %v954, 1.442695
    %v956 = vpow.pop %v955
    %v957 = vsel %vm950, %v956, 0.0
    %958 = vadd.xlane.f32.xlu0 %v957
    %v959 = vpop.xlane.xlu0 %958
    %v960 = vlog2.pop %v959
    %v961 = vmul.f32 %v960, 0.6931472
    %v962 = vsub.f32 %v954, %v961
    %963 = vst.msk [vmem:[#allocation2] sm:$0x3] %vm950, %v962
    // Predicated region
    $region70: #{graph_network_forward.1} parent=1 // pred_check
      _
    $region71: #{graph_network_forward.1} parent=1 // pred_check_branch
      %965 = sbr.rel (0) target = $region73
    $region72: #{graph_network_forward.1} parent=1 // pred_region
      %967 = vsyncadd [#allocation3], 0
      %s969 = sshll.u32 [#allocation2], 4
      %s970 = int_to_ptr.vmem [resolvable:$true] %s969
      %s971 = sshll.u32 %s17, 4
      %s972 = int_to_ptr.hbm [resolvable:$true] %s971
      %974 = dma.vmem_to_hbm [thread:$0]  %s970, 32, %s972, [#allocation3]
    $region73: #{graph_network_forward.1} parent=1 // pred_fallthru
      _
    // Predicated region
    $region74: #{graph_network_forward.1} parent=1 // pred_check
      _
    $region75: #{graph_network_forward.1} parent=1 // pred_check_branch
      %976 = sbr.rel (0) target = $region77
    $region76: #{graph_network_forward.1} parent=1 // pred_region
      %978 = dma.done [#allocation3], 32
    $region77: #{graph_network_forward.1} parent=1 // pred_fallthru
      _
    %979 = vsyncpa [#allocation3], 1

</llo_original>
